<compile_context>
chip_gen: v7x
topology: tpu7x:2x2x1
jax: 0.10.0
libtpu: 0.0.40
codegen_flags: <defaults>
</compile_context>

<pallas_src>
import jax
import jax.numpy as jnp
from jax import lax
from jax.experimental import pallas as pl
from jax.experimental.pallas import tpu as pltpu

IN_CH = 3                 # module hardcodes final_conv in-channels = 4*256 + 3 => in_ch == 3
OUT_CH = 256
DILATIONS = (6, 12, 18)
PAD = max(DILATIONS)
N_TAPS = 1 + 3 * 9        # one 1x1 tap + 9 taps for each of the 3 dilated 3x3 convs
K = N_TAPS * IN_CH        # 84 (kept unpadded in HBM)
TILE_ROWS_TARGET = 2048   # spatial (H*W) rows per grid step


def aspp_kernel(patch_ref, w_ref, bias_ref, out_ref):
    """(tile, K) bf16 @ (K, 256) bf16 -> f32, + bias, stored transposed (NCHW)."""
    acc = jnp.dot(patch_ref[0], w_ref[...], preferred_element_type=jnp.float32)
    acc = acc + bias_ref[0]                 # (tile, 256) + (1, 256) broadcast
    out_ref[0] = acc.T                      # (256, tile): channel-major output block


def _pick_tile_rows(rows, n_images):
    """Big, lane-dense tiles that divide rows; >=2 grid steps when N == 1 (v7x)."""
    limit = min(TILE_ROWS_TARGET, rows)
    if n_images == 1 and rows >= 16:
        limit = min(limit, rows // 2)       # keep both v7x TensorCores busy
    limit = max(8, (limit // 8) * 8)
    for tile in range(limit - limit % 128, 0, -128):   # prefer multiples of 128
        if rows % tile == 0:
            return tile
    for tile in range(limit, 0, -8):
        if rows % tile == 0:
            return tile
    return limit                             # fallback: pad rows, slice afterwards


def build_patches(x_nhwc):
    """Lane-dense im2col: (N, H*W, K), tap-major / channel-minor ordering."""
    N, H, W, C = x_nhwc.shape
    xpad = jnp.pad(x_nhwc, ((0, 0), (PAD, PAD), (PAD, PAD), (0, 0)))
    taps = [x_nhwc]                           # center tap for the 1x1 conv
    for d in DILATIONS:
        for ky in range(3):
            for kx in range(3):
                y0 = PAD + (ky - 1) * d
                x0 = PAD + (kx - 1) * d
                taps.append(xpad[:, y0:y0 + H, x0:x0 + W, :])
    patches = jnp.concatenate(taps, axis=-1)  # (N, H, W, 28*C)
    return patches.reshape(N, H * W, K)


def fuse_params(torch_params, in_ch=IN_CH):
    """Fold branch convs through the final 1x1 conv (exact linear algebra)."""
    w1x1, b1x1, w3_list, b3_list, wfinal, bfinal = torch_params
    wf2d = wfinal.reshape(OUT_CH, 4 * OUT_CH + in_ch)                        # (256, 1027)
    wfm = [wf2d[:, i * OUT_CH:(i + 1) * OUT_CH].T for i in range(4)]         # (256, 256)
    wf5 = wf2d[:, 4 * OUT_CH:].T                                             # (in_ch, 256)

    # Per-tap (in_ch, 256) fused weights, same tap ordering as build_patches.
    w1 = w1x1.reshape(OUT_CH, in_ch).T                                       # (in_ch, 256)
    tap_ws = [w1 @ wfm[0]]
    for i, w3 in enumerate(w3_list):
        for ky in range(3):
            for kx in range(3):
                tap_ws.append(w3[:, :, ky, kx].T @ wfm[i + 1])
    w_fused = jnp.concatenate(tap_ws, axis=0)                                # (K, 256)

    # Image-independent part of the fused bias.
    bias_static = (bfinal[None, :]
                   + b1x1[None, :] @ wfm[0]
                   + sum(b3_list[i][None, :] @ wfm[i + 1] for i in range(3)))    # (1, 256)
    return (w_fused.astype(jnp.bfloat16),
            bias_static.astype(jnp.float32),
            wf5.astype(jnp.float32))


@jax.jit
def aspp_forward(x_nchw, w_fused, bias_static, wf5):
    """x_nchw: (N, Cin, H, W) float32 -> (N, 256, H, W) float32."""
    N, C, H, W = x_nchw.shape
    x_nhwc = jnp.transpose(x_nchw, (0, 2, 3, 1))                 # small input, cheap

    # Pooled branch == per-image constant; fold into per-image bias (f32 math).
    pooled = jnp.mean(x_nhwc, axis=(1, 2))                       # (N, Cin)
    bias = (bias_static + pooled @ wf5).reshape(N, 1, OUT_CH).astype(jnp.float32)

    # bf16 before im2col halves the intermediate patch traffic; K stays 84.
    patches = build_patches(x_nhwc.astype(jnp.bfloat16))         # (N, H*W, 84) bf16

    rows = H * W
    tile = _pick_tile_rows(rows, N)
    rows_padded = pl.cdiv(rows, tile) * tile
    if rows_padded != rows:
        patches = jnp.pad(patches, ((0, 0), (0, rows_padded - rows), (0, 0)))

    cost = pl.CostEstimate(
        flops=2 * N * rows * K * OUT_CH,
        transcendentals=0,
        bytes_accessed=(N * rows * K * 2 + w_fused.size * 2
                        + bias.size * 4 + N * rows * OUT_CH * 4),
    )

    out = pl.pallas_call(
        aspp_kernel,
        out_shape=jax.ShapeDtypeStruct((N, OUT_CH, rows_padded), jnp.float32),
        grid=(N, rows_padded // tile),
        in_specs=[
            pl.BlockSpec((1, tile, K), lambda n, t: (n, t, 0)),
            pl.BlockSpec((K, OUT_CH), lambda n, t: (0, 0)),
            pl.BlockSpec((1, 1, OUT_CH), lambda n, t: (n, 0, 0)),
        ],
        out_specs=pl.BlockSpec((1, OUT_CH, tile), lambda n, t: (n, 0, t)),
        compiler_params=pltpu.CompilerParams(
            dimension_semantics=("parallel", "parallel")),
        cost_estimate=cost,
    )(patches, w_fused, bias)

    if rows_padded != rows:
        out = out[:, :, :rows]
    return out.reshape(N, OUT_CH, H, W)       # metadata-only when tile divides rows


def init_params(key, in_ch=IN_CH):
    """Deterministic synthetic parameters in PyTorch (OIHW) layout."""
    keys = jax.random.split(key, 10)
    s = 0.1
    w1x1 = s * jax.random.normal(keys[0], (OUT_CH, in_ch, 1, 1), jnp.float32)
    b1x1 = s * jax.random.normal(keys[1], (OUT_CH,), jnp.float32)
    w3_list = [s * jax.random.normal(keys[2 + i], (OUT_CH, in_ch, 3, 3), jnp.float32)
               for i in range(3)]
    b3_list = [s * jax.random.normal(keys[5 + i], (OUT_CH,), jnp.float32)
               for i in range(3)]
    wfinal = s * jax.random.normal(keys[8], (OUT_CH, 4 * OUT_CH + in_ch, 1, 1), jnp.float32)
    bfinal = s * jax.random.normal(keys[9], (OUT_CH,), jnp.float32)
    return (w1x1, b1x1, w3_list, b3_list, wfinal, bfinal)


def aspp_reference(x, torch_params):
    """Pure-JAX NCHW reference matching the PyTorch forward semantics."""
    w1x1, b1x1, w3_list, b3_list, wfinal, bfinal = torch_params
    dn = ('NCHW', 'OIHW', 'NCHW')

    def conv(x, w, b, dilation=1, padding=0):
        y = lax.conv_general_dilated(
            x, w, window_strides=(1, 1),
            padding=((padding, padding), (padding, padding)),
            rhs_dilation=(dilation, dilation), dimension_numbers=dn)
        return y + b[None, :, None, None]

    feats = [conv(x, w1x1, b1x1)]
    for w, b, d in zip(w3_list, b3_list, DILATIONS):
        feats.append(conv(x, w, b, dilation=d, padding=d))
    pooled = jnp.mean(x, axis=(2, 3), keepdims=True)
    feats.append(jnp.broadcast_to(pooled, x.shape))   # bilinear upsample of 1x1 == broadcast
    cat = jnp.concatenate(feats, axis=1)
    return conv(cat, wfinal, bfinal)


if __name__ == "__main__":
    key = jax.random.PRNGKey(0)
    kx, kp = jax.random.split(key)

    N, H, W = 2, 16, 16
    x = jax.random.normal(kx, (N, IN_CH, H, W), jnp.float32)
    torch_params = init_params(kp)
    w_fused, bias_static, wf5 = fuse_params(torch_params)

    out = aspp_forward(x, w_fused, bias_static, wf5)
    out = jax.block_until_ready(out)
    assert out.shape == (N, OUT_CH, H, W), out.shape

    ref = aspp_reference(x, torch_params)
    # bf16 operands + fused-weight rounding order => slightly looser tolerance.
    if not jnp.allclose(out, ref, atol=5e-2, rtol=5e-2):
        max_err = float(jnp.max(jnp.abs(out - ref)))
        raise AssertionError(f"Pallas/reference mismatch, max abs err = {max_err}")

    print("KERNEL_OK")
</pallas_src>

<mosaic_0001>
module attributes {stable_mosaic.version = 11 : i64} {
  func.func @aspp_kernel(%arg0: i32, %arg1: i32, %arg2: memref<1x256x84xbf16, #tpu.memory_space<vmem>>, %arg3: memref<84x256xbf16, #tpu.memory_space<vmem>>, %arg4: memref<1x1x256xf32, #tpu.memory_space<vmem>>, %arg5: memref<1x256x256xf32, #tpu.memory_space<vmem>>) attributes {dimension_semantics = [#tpu.dimension_semantics<parallel>, #tpu.dimension_semantics<parallel>], iteration_bounds = array<i64: 2, 1>, scalar_prefetch = 0 : i64, scratch_operands = 0 : i64, tpu.core_type = #tpu.core_type<tc>, window_params = [{transform_indices = @transform_0, window_bounds = array<i64: 1, 256, 84>}, {pipeline_mode = #tpu.pipeline_mode<synchronous>, transform_indices = @transform_1, window_bounds = array<i64: 84, 256>}, {transform_indices = @transform_2, window_bounds = array<i64: 1, 1, 256>}, {transform_indices = @transform_3, window_bounds = array<i64: 1, 256, 256>}]} {
    %c0 = arith.constant 0 : index
    %c0_0 = arith.constant 0 : index
    %c0_1 = arith.constant 0 : index
    %0 = vector.load %arg2[%c0, %c0_0, %c0_1] : memref<1x256x84xbf16, #tpu.memory_space<vmem>>, vector<1x256x84xbf16>
    %1 = vector.shape_cast %0 : vector<1x256x84xbf16> to vector<256x84xbf16>
    %c0_2 = arith.constant 0 : index
    %c0_3 = arith.constant 0 : index
    %2 = vector.load %arg3[%c0_2, %c0_3] : memref<84x256xbf16, #tpu.memory_space<vmem>>, vector<84x256xbf16>
    %cst = arith.constant dense<0.000000e+00> : vector<256x256xf32>
    %3 = tpu.matmul %1, %2, %cst {dimension_numbers = #tpu.dot_dimension_numbers<[1], [0], [0], [1], [0, 0, 1, 1], [], []>} : vector<256x84xbf16>, vector<84x256xbf16>, vector<256x256xf32> -> vector<256x256xf32>
    %c0_4 = arith.constant 0 : index
    %c0_5 = arith.constant 0 : index
    %c0_6 = arith.constant 0 : index
    %4 = vector.load %arg4[%c0_4, %c0_5, %c0_6] : memref<1x1x256xf32, #tpu.memory_space<vmem>>, vector<1x1x256xf32>
    %5 = vector.shape_cast %4 : vector<1x1x256xf32> to vector<1x256xf32>
    %6 = vector.broadcast %5 : vector<1x256xf32> to vector<256x256xf32>
    %7 = arith.addf %3, %6 : vector<256x256xf32>
    %8 = tpu.transpose %7, [1, 0] : vector<256x256xf32> -> vector<256x256xf32>
    %c0_7 = arith.constant 0 : index
    %c0_8 = arith.constant 0 : index
    %c0_9 = arith.constant 0 : index
    %9 = vector.load %arg5[%c0_7, %c0_8, %c0_9] : memref<1x256x256xf32, #tpu.memory_space<vmem>>, vector<1x256x256xf32>
    %10 = vector.shape_cast %9 : vector<1x256x256xf32> to vector<256x256xf32>
    %11 = vector.shape_cast %8 : vector<256x256xf32> to vector<1x256x256xf32>
    tpu.vector_store %arg5[%c0_7, %c0_8, %c0_9], %11 {strides = array<i32>} : memref<1x256x256xf32, #tpu.memory_space<vmem>>, vector<1x256x256xf32>,
    return
  }
  func.func @transform_0(%arg0: i32, %arg1: i32) -> (i32, i32, i32) {
    %c0_i32 = arith.constant 0 : i32
    %c0_i32_0 = arith.constant 0 : i32
    return %arg0, %arg1, %c0_i32 : i32, i32, i32
  }
  func.func @transform_1(%arg0: i32, %arg1: i32) -> (i32, i32) {
    %c0_i32 = arith.constant 0 : i32
    %c0_i32_0 = arith.constant 0 : i32
    %c0_i32_1 = arith.constant 0 : i32
    return %c0_i32, %c0_i32_0 : i32, i32
  }
  func.func @transform_2(%arg0: i32, %arg1: i32) -> (i32, i32, i32) {
    %c0_i32 = arith.constant 0 : i32
    %c0_i32_0 = arith.constant 0 : i32
    %c0_i32_1 = arith.constant 0 : i32
    return %arg0, %c0_i32, %c0_i32_0 : i32, i32, i32
  }
  func.func @transform_3(%arg0: i32, %arg1: i32) -> (i32, i32, i32) {
    %c0_i32 = arith.constant 0 : i32
    %c0_i32_0 = arith.constant 0 : i32
    return %arg0, %c0_i32, %arg1 : i32, i32, i32
  }
}

</mosaic_0001>

<llo_original>
// kernel: aspp_forward.1
$region0: #{aspp_forward.1}
  #allocation0 [shape = 'u32[]', space=smem, size = 0x4, offset = 0x4, fixed_abs, tag = 'smem constant byte address 0x4 - core index']
  #allocation1 [shape = 'u32[144,128]{1,0:T(1,128)}', space=vmem, size = 0x12000, scoped, tag = 'internal scratch']
  %s0 = inlined_call_operand.vmem [shape: bf16[2,256,84], index: 0, kind: input, shape index: {}]
  %s1 = inlined_call_operand.vmem [shape: bf16[84,256], index: 1, kind: input, shape index: {}]
  %s2 = inlined_call_operand.vmem [shape: f32[2,1,256], index: 2, kind: input, shape index: {}]
  %s3 = inlined_call_operand.vmem [shape: f32[2,256,256], index: 3, kind: output, shape index: {}]
  %s4 = sld [smem:[#allocation0]]
  $region45: #{aspp_forward.1} parent=0
    _
  %s6 = ssub.s32 1, %s4
  %s7 = scalar_select 0, %s6, %s4
  loop: start=0, step=1, limit=4
  $region2: #{aspp_forward.1} parent=0 // loop_pre_header
    _
  $region3: #{aspp_forward.1} parent=0 // loop_header
    %s9 = sphi 0, %s13
    %p10 = scmp.ge.s32.totalorder %s9, 4
    %s16 = sphi 0, %s28
    %s17 = sphi 0, %s24
    %s18 = sphi 0, %s16
    %s19 = sphi 0, %s17
    %s20 = sphi 0, %s18
    %s21 = sphi 0, %s19
    %s33 = sphi 0, %s35
    %s36 = sphi 0, %s33
    %s37 = sphi 0, %s36
    %s53 = sphi 0, %s37
    %s57 = sphi 0, %s57
    %s59 = sphi 0, %s57
    %s60 = sphi 0, %s59
    %s74 = sphi 0, %s60
    %s80 = sphi 0, %s82
    %s83 = sphi 0, %s80
    %s84 = sphi 0, %s83
    %s100 = sphi 0, %s84
    %s108 = sphi 0, %s110
    %s111 = sphi 0, %s108
    %s112 = sphi 0, %s111
    %s128 = sphi 0, %s112
  $region4: #{aspp_forward.1} parent=0 // loop_header_branch
    %12 = sbr.rel (%p10) target = $region8
  $region5: #{aspp_forward.1} parent=0 // loop_body
    %s14 = ssub.s32 %s9, 1
    %s15 = ssub.s32 %s9, 2
    %s22 = sadd.s32 1, %s17
    %p23 = scmp.ge.s32.totalorder %s22, 1
    %s24 = scalar_select %p23, 0, %s22
    %s25 = sadd.s32 1, %s16
    %s26 = scalar_select %p23, %s25, %s16
    %p27 = scmp.ge.s32.totalorder %s26, 2
    %s28 = scalar_select %p27, 0, %s26
    %s29 = ssub.s32 %s16, %s28
    %s30 = ssub.s32 %s17, %s24
    %s31 = sor.u32 %s29, %s30
    %p32 = scmp.eq.s32.totalorder %s31, 0
    %s34 = sadd.s32 %s33, 1
    %s35 = scalar_select %p32, %s33, %s34
    %p38 = pneg %p32
    %p39 = scmp.eq.s32.totalorder %s9, 1
    %p40 = por %p38, %p39
    %p41 = scmp.ne.s32.totalorder %s33, %s36
    %p42 = scmp.eq.s32.totalorder %s9, 0
    %p43 = por %p41, %p42
    %p44 = scmp.ne.s32.totalorder %s33, %s36
    %p45 = scmp.eq.s32.totalorder %s14, 1
    %p46 = por %p44, %p45
    %p47 = scmp.ne.s32.totalorder %s36, %s37
    %p48 = scmp.eq.s32.totalorder %s14, 0
    %p49 = por %p47, %p48
    %p50 = scmp.ne.s32.totalorder %s36, %s37
    %p51 = scmp.eq.s32.totalorder %s15, 1
    %p52 = por %p50, %p51
    %p54 = scmp.ne.s32.totalorder %s37, %s53
    %p55 = scmp.eq.s32.totalorder %s15, 0
    %p56 = por %p54, %p55
    %s58 = sadd.s32 %s57, 1
    %p61 = scmp.eq.s32.totalorder %s9, 1
    %p62 = scmp.ne.s32.totalorder %s57, %s59
    %p63 = scmp.eq.s32.totalorder %s9, 0
    %p64 = por %p62, %p63
    %p65 = scmp.ne.s32.totalorder %s57, %s59
    %p66 = scmp.eq.s32.totalorder %s14, 1
    %p67 = por %p65, %p66
    %p68 = scmp.ne.s32.totalorder %s59, %s60
    %p69 = scmp.eq.s32.totalorder %s14, 0
    %p70 = por %p68, %p69
    %p71 = scmp.ne.s32.totalorder %s59, %s60
    %p72 = scmp.eq.s32.totalorder %s15, 1
    %p73 = por %p71, %p72
    %p75 = scmp.ne.s32.totalorder %s60, %s74
    %p76 = scmp.eq.s32.totalorder %s15, 0
    %p77 = por %p75, %p76
    %s78 = ssub.s32 %s16, %s28
    %p79 = scmp.eq.s32.totalorder %s78, 0
    %s81 = sadd.s32 %s80, 1
    %s82 = scalar_select %p79, %s80, %s81
    %p85 = pneg %p79
    %p86 = scmp.eq.s32.totalorder %s9, 1
    %p87 = por %p85, %p86
    %p88 = scmp.ne.s32.totalorder %s80, %s83
    %p89 = scmp.eq.s32.totalorder %s9, 0
    %p90 = por %p88, %p89
    %p91 = scmp.ne.s32.totalorder %s80, %s83
    %p92 = scmp.eq.s32.totalorder %s14, 1
    %p93 = por %p91, %p92
    %p94 = scmp.ne.s32.totalorder %s83, %s84
    %p95 = scmp.eq.s32.totalorder %s14, 0
    %p96 = por %p94, %p95
    %p97 = scmp.ne.s32.totalorder %s83, %s84
    %p98 = scmp.eq.s32.totalorder %s15, 1
    %p99 = por %p97, %p98
    %p101 = scmp.ne.s32.totalorder %s84, %s100
    %p102 = scmp.eq.s32.totalorder %s15, 0
    %p103 = por %p101, %p102
    %s104 = ssub.s32 %s16, %s28
    %s105 = ssub.s32 %s17, %s24
    %s106 = sor.u32 %s104, %s105
    %p107 = scmp.eq.s32.totalorder %s106, 0
    %s109 = sadd.s32 %s108, 1
    %s110 = scalar_select %p107, %s108, %s109
    %p113 = pneg %p107
    %p114 = scmp.eq.s32.totalorder %s9, 1
    %p115 = por %p113, %p114
    %p116 = scmp.ne.s32.totalorder %s108, %s111
    %p117 = scmp.eq.s32.totalorder %s9, 0
    %p118 = por %p116, %p117
    %p119 = scmp.ne.s32.totalorder %s108, %s111
    %p120 = scmp.eq.s32.totalorder %s14, 1
    %p121 = por %p119, %p120
    %p122 = scmp.ne.s32.totalorder %s111, %s112
    %p123 = scmp.eq.s32.totalorder %s14, 0
    %p124 = por %p122, %p123
    %p125 = scmp.ne.s32.totalorder %s111, %s112
    %p126 = scmp.eq.s32.totalorder %s15, 1
    %p127 = por %p125, %p126
    %p129 = scmp.ne.s32.totalorder %s112, %s128
    %p130 = scmp.eq.s32.totalorder %s15, 0
    %p131 = por %p129, %p130
    %p132 = scmp.le.s32.totalorder 1, %s9
    %p133 = scmp.lt.s32.totalorder %s9, 3
    %p134 = pnand %p132, %p133
    %p135 = pneg %p134
    // Predicated region
    $region9: #{aspp_forward.1} parent=5 // pred_check
      _
    $region10: #{aspp_forward.1} parent=5 // pred_check_branch
      %137 = sbr.rel (%p134) target = $region12
    $region11: #{aspp_forward.1} parent=5 // pred_region
      %s138 = ssub.s32 %s9, 1
      // Predicated region
      $region13: #{aspp_forward.1} parent=11 // pred_check
        %p139 = pneg %p70
      $region14: #{aspp_forward.1} parent=11 // pred_check_branch
        %141 = sbr.rel (%p139) target = $region16
      $region15: #{aspp_forward.1} parent=11 // pred_region
        _
      $region16: #{aspp_forward.1} parent=11 // pred_fallthru
        _
    $region12: #{aspp_forward.1} parent=5 // pred_fallthru
      _
    %p142 = scmp.lt.s32.totalorder %s9, 2
    // Predicated region
    $region17: #{aspp_forward.1} parent=5 // pred_check
      %p143 = pneg %p142
    $region18: #{aspp_forward.1} parent=5 // pred_check_branch
      %145 = sbr.rel (%p143) target = $region20
    $region19: #{aspp_forward.1} parent=5 // pred_region
      // Predicated region
      $region21: #{aspp_forward.1} parent=19 // pred_check
        %p146 = pneg %p43
      $region22: #{aspp_forward.1} parent=19 // pred_check_branch
        %148 = sbr.rel (%p146) target = $region24
      $region23: #{aspp_forward.1} parent=19 // pred_region
        %s149 = smul.u32 32, %s17
        %p150 = scmp.lt.s32.totalorder %s16, 1
        %s151 = scalar_select %p150, %s16, 1
        %p152 = scmp.lt.s32.totalorder %s149, 31
        %s153 = scalar_select %p152, %s149, 31
        %s154 = smul.addr %s151, 32
        %s155 = sadd.s32 %s153, %s154
        %s156 = smul.addr %s155, 4
        %s157 = scalar_lea.vmem %s0, %s156
        %s158 = smul.u32 32, %s17
      $region24: #{aspp_forward.1} parent=19 // pred_fallthru
        _
      // Predicated region
      $region25: #{aspp_forward.1} parent=19 // pred_check
        %p159 = pneg %p90
      $region26: #{aspp_forward.1} parent=19 // pred_check_branch
        %161 = sbr.rel (%p159) target = $region28
      $region27: #{aspp_forward.1} parent=19 // pred_region
        %p162 = scmp.lt.s32.totalorder %s16, 1
        %s163 = scalar_select %p162, %s16, 1
        %s164 = smul.addr %s163, 2
        %s165 = scalar_lea.vmem %s2, %s164
      $region28: #{aspp_forward.1} parent=19 // pred_fallthru
        _
    $region20: #{aspp_forward.1} parent=5 // pred_fallthru
      _
    %p166 = scmp.le.s32.totalorder 1, %s9
    %p167 = scmp.lt.s32.totalorder %s9, 3
    %p168 = pnand %p166, %p167
    %p169 = pneg %p168
    // Predicated region
    $region29: #{aspp_forward.1} parent=5 // pred_check
      _
    $region30: #{aspp_forward.1} parent=5 // pred_check_branch
      %171 = sbr.rel (%p168) target = $region32
    $region31: #{aspp_forward.1} parent=5 // pred_region
      %s172 = ssub.s32 %s9, 1
      %s173 = smul.u32 32, %s19
      %p174 = scmp.lt.s32.totalorder %s18, 1
      %s175 = scalar_select %p174, %s18, 1
      %p176 = scmp.lt.s32.totalorder %s173, 31
      %s177 = scalar_select %p176, %s173, 31
      %s178 = smul.addr %s175, 32
      %s179 = sadd.s32 %s177, %s178
      %s180 = smul.addr %s179, 4
      %s181 = scalar_lea.vmem %s0, %s180
      %p182 = pneg %p49
      %p183 = pneg %p46
      %p184 = pneg %p70
      %p185 = pneg %p67
      %p186 = scmp.lt.s32.totalorder %s18, 1
      %s187 = scalar_select %p186, %s18, 1
      %s188 = smul.addr %s187, 2
      %s189 = scalar_lea.vmem %s2, %s188
      %p190 = pneg %p96
      %p191 = pneg %p93
      %p192 = pneg %p124
      %p193 = pneg %p121
      %s194 = smul.u32 2, %s19
      %p195 = scmp.lt.s32.totalorder %s18, 1
      %s196 = scalar_select %p195, %s18, 1
      %p197 = scmp.lt.s32.totalorder %s194, 1
      %s198 = scalar_select %p197, %s194, 1
      %s199 = smul.addr %s196, 64
      %s200 = sadd.s32 %s198, %s199
      %s201 = smul.addr %s200, 8
      %s202 = scalar_lea.vmem %s3, %s201
      %s203 = smul.u32 32, %s19
      %p204 = scmp.lt.s32.totalorder %s18, 1
      %s205 = scalar_select %p204, %s18, 1
      %p206 = scmp.lt.s32.totalorder %s203, 31
      %s207 = scalar_select %p206, %s203, 31
      %s208 = smul.addr %s205, 32
      %s209 = sadd.s32 %s207, %s208
      %s210 = smul.addr %s209, 4
      %s211 = scalar_lea.vmem %s0, %s210
      %s212 = smul.u32 32, %s19
      %p213 = scmp.lt.s32.totalorder %s18, 1
      %s214 = scalar_select %p213, %s18, 1
      %s215 = smul.addr %s214, 2
      %s216 = scalar_lea.vmem %s2, %s215
      %s217 = smul.u32 2, %s19
      %p218 = scmp.lt.s32.totalorder %s18, 1
      %s219 = scalar_select %p218, %s18, 1
      %p220 = scmp.lt.s32.totalorder %s217, 1
      %s221 = scalar_select %p220, %s217, 1
      %s222 = smul.addr %s219, 64
      %s223 = sadd.s32 %s221, %s222
      %s224 = smul.addr %s223, 8
      %s225 = scalar_lea.vmem %s3, %s224
      %s226 = smul.u32 2, %s19
      %v228 = vld [vmem:[%s211] sm:$0xf]
      %v229 = vld [vmem:[%s211 + $0x4] sm:$0xf]
      %v230 = vld [vmem:[%s211 + $0x8] sm:$0xf]
      %v231 = vld [vmem:[%s211 + $0xc] sm:$0xf]
      %v232 = vld [vmem:[%s211 + $0x10] sm:$0xf]
      %v233 = vld [vmem:[%s211 + $0x14] sm:$0xf]
      %v234 = vld [vmem:[%s211 + $0x18] sm:$0xf]
      %v235 = vld [vmem:[%s211 + $0x1c] sm:$0xf]
      %v236 = vld [vmem:[%s211 + $0x20] sm:$0xf]
      %v237 = vld [vmem:[%s211 + $0x24] sm:$0xf]
      %v238 = vld [vmem:[%s211 + $0x28] sm:$0xf]
      %v239 = vld [vmem:[%s211 + $0x2c] sm:$0xf]
      %v240 = vld [vmem:[%s211 + $0x30] sm:$0xf]
      %v241 = vld [vmem:[%s211 + $0x34] sm:$0xf]
      %v242 = vld [vmem:[%s211 + $0x38] sm:$0xf]
      %v243 = vld [vmem:[%s211 + $0x3c] sm:$0xf]
      %v244 = vld [vmem:[%s211 + $0x40] sm:$0xf]
      %v245 = vld [vmem:[%s211 + $0x44] sm:$0xf]
      %v246 = vld [vmem:[%s211 + $0x48] sm:$0xf]
      %v247 = vld [vmem:[%s211 + $0x4c] sm:$0xf]
      %v248 = vld [vmem:[%s211 + $0x50] sm:$0xf]
      %v249 = vld [vmem:[%s211 + $0x54] sm:$0xf]
      %v250 = vld [vmem:[%s211 + $0x58] sm:$0xf]
      %v251 = vld [vmem:[%s211 + $0x5c] sm:$0xf]
      %v252 = vld [vmem:[%s211 + $0x60] sm:$0xf]
      %v253 = vld [vmem:[%s211 + $0x64] sm:$0xf]
      %v254 = vld [vmem:[%s211 + $0x68] sm:$0xf]
      %v255 = vld [vmem:[%s211 + $0x6c] sm:$0xf]
      %v256 = vld [vmem:[%s211 + $0x70] sm:$0xf]
      %v257 = vld [vmem:[%s211 + $0x74] sm:$0xf]
      %v258 = vld [vmem:[%s211 + $0x78] sm:$0xf]
      %v259 = vld [vmem:[%s211 + $0x7c] sm:$0xf]
      %v260 = vld [vmem:[%s1] sm:$0xff]
      %v261 = vld [vmem:[%s1 + $0x8] sm:$0xff]
      %v262 = vld [vmem:[%s1 + $0x10] sm:$0xff]
      %v263 = vld [vmem:[%s1 + $0x18] sm:$0xff]
      %v264 = vld [vmem:[%s1 + $0x20] sm:$0xff]
      %v265 = vld [vmem:[%s1 + $0x28] sm:$0xff]
      %v266 = vld [vmem:[%s1 + $0x30] sm:$0xff]
      %v267 = vld [vmem:[%s1 + $0x38] sm:$0xff]
      %v268 = vld [vmem:[%s1 + $0x40] sm:$0xff]
      %v269 = vld [vmem:[%s1 + $0x48] sm:$0xff]
      %v270 = vld [vmem:[%s1 + $0x50] sm:$0x33]
      %v271 = vld [vmem:[%s216] sm:$0x3]
      %v273 = vlaneseq
      %v274 = vshrl.u32 %v273, 7
      %v275 = vsub.s32 0, %v274
      %v276 = vrot.slane %v271, %v275
      %v277 = vlaneseq
      %v278 = vshrl.u32 %v277, 7
      %v279 = vsub.s32 1, %v278
      %v280 = vrot.slane %v271, %v279
      %v315 = vunpack.c.l.b16 %v228
      %v316 = vunpack.c.l.b16 %v229
      %v317 = vunpack.c.l.b16 %v230
      %v318 = vunpack.c.l.b16 %v231
      %v319 = vunpack.c.l.b16 %v232
      %v320 = vunpack.c.l.b16 %v233
      %v321 = vunpack.c.l.b16 %v234
      %v322 = vunpack.c.l.b16 %v235
      %v323 = vunpack.c.l.b16 %v236
      %v324 = vunpack.c.l.b16 %v237
      %v325 = vunpack.c.l.b16 %v238
      %v326 = vunpack.c.l.b16 %v239
      %v327 = vunpack.c.l.b16 %v240
      %v328 = vunpack.c.l.b16 %v241
      %v329 = vunpack.c.l.b16 %v242
      %v330 = vunpack.c.l.b16 %v243
      %v331 = vunpack.c.l.b16 %v244
      %v332 = vunpack.c.l.b16 %v245
      %v333 = vunpack.c.l.b16 %v246
      %v334 = vunpack.c.l.b16 %v247
      %v335 = vunpack.c.l.b16 %v248
      %v336 = vunpack.c.l.b16 %v249
      %v337 = vunpack.c.l.b16 %v250
      %v338 = vunpack.c.l.b16 %v251
      %v339 = vunpack.c.l.b16 %v252
      %v340 = vunpack.c.l.b16 %v253
      %v341 = vunpack.c.l.b16 %v254
      %v342 = vunpack.c.l.b16 %v255
      %v343 = vunpack.c.l.b16 %v256
      %v344 = vunpack.c.l.b16 %v257
      %v345 = vunpack.c.l.b16 %v258
      %v346 = vunpack.c.l.b16 %v259
      %v347 = vpack.c.b16 %v316, %v315
      %v348 = vpack.c.b16 %v318, %v317
      %v349 = vpack.c.b16 %v320, %v319
      %v350 = vpack.c.b16 %v322, %v321
      %v351 = vpack.c.b16 %v324, %v323
      %v352 = vpack.c.b16 %v326, %v325
      %v353 = vpack.c.b16 %v328, %v327
      %v354 = vpack.c.b16 %v330, %v329
      %v355 = vpack.c.b16 %v332, %v331
      %v356 = vpack.c.b16 %v334, %v333
      %v357 = vpack.c.b16 %v336, %v335
      %v358 = vpack.c.b16 %v338, %v337
      %v359 = vpack.c.b16 %v340, %v339
      %v360 = vpack.c.b16 %v342, %v341
      %v361 = vpack.c.b16 %v344, %v343
      %v362 = vpack.c.b16 %v346, %v345
      %v374 = vunpack.c.l.b16 %v260
      %v375 = vunpack.c.h.b16 %v260
      %v376 = vunpack.c.l.b16 %v261
      %v377 = vunpack.c.h.b16 %v261
      %v378 = vunpack.c.l.b16 %v262
      %v379 = vunpack.c.h.b16 %v262
      %v380 = vunpack.c.l.b16 %v263
      %v381 = vunpack.c.h.b16 %v263
      %v382 = vunpack.c.l.b16 %v264
      %v383 = vunpack.c.h.b16 %v264
      %v384 = vunpack.c.l.b16 %v265
      %v385 = vunpack.c.h.b16 %v265
      %v386 = vunpack.c.l.b16 %v266
      %v387 = vunpack.c.h.b16 %v266
      %v388 = vunpack.c.l.b16 %v267
      %v389 = vunpack.c.h.b16 %v267
      %v390 = vunpack.c.l.b16 %v268
      %v391 = vunpack.c.h.b16 %v268
      %v392 = vunpack.c.l.b16 %v269
      %v393 = vunpack.c.h.b16 %v269
      %v394 = vunpack.c.l.b16 %v270
      %v395 = vunpack.c.h.b16 %v270
      %v396 = vpack.c.b16 %v376, %v374
      %v397 = vpack.c.b16 %v377, %v375
      %v398 = vpack.c.b16 %v380, %v378
      %v399 = vpack.c.b16 %v381, %v379
      %v400 = vpack.c.b16 %v384, %v382
      %v401 = vpack.c.b16 %v385, %v383
      %v402 = vpack.c.b16 %v388, %v386
      %v403 = vpack.c.b16 %v389, %v387
      %v404 = vpack.c.b16 %v392, %v390
      %v405 = vpack.c.b16 %v393, %v391
      %v406 = vpack.c.b16 %v394, %v394
      %v407 = vpack.c.b16 %v395, %v395
      %vm418 = vcmask 687104
      %v420 = vsel %vm418, %v347, 0
      %v423 = vsel %vm418, %v348, 0
      %v426 = vsel %vm418, %v349, 0
      %v429 = vsel %vm418, %v350, 0
      %v432 = vsel %vm418, %v351, 0
      %v435 = vsel %vm418, %v352, 0
      %v438 = vsel %vm418, %v353, 0
      %v441 = vsel %vm418, %v354, 0
      %v444 = vsel %vm418, %v355, 0
      %v447 = vsel %vm418, %v356, 0
      %v450 = vsel %vm418, %v357, 0
      %v453 = vsel %vm418, %v358, 0
      %v456 = vsel %vm418, %v359, 0
      %v459 = vsel %vm418, %v360, 0
      %v462 = vsel %vm418, %v361, 0
      %v465 = vsel %vm418, %v362, 0
      %vm467 = vcmask 1041408
      %v469 = vsel %vm467, %v406, 0
      %v472 = vsel %vm467, %v407, 0
      %474 = vmatprep.subr.bf16.mxu0 %v397
      %475 = vmatpush1.bf16.msra.mxu0 %v396
      %476 = vmatprep.subr.bf16.mxu0 %v399
      %477 = vmatpush1.bf16.msra.mxu0 %v398
      %478 = vmatprep.subr.bf16.mxu0 %v401
      %479 = vmatpush1.bf16.msra.mxu0 %v400
      %480 = vmatprep.subr.bf16.mxu0 %v403
      %481 = vmatpush1.bf16.msra.mxu0 %v402
      %482 = vmatprep.subr.bf16.mxu0 %v405
      %483 = vmatpush1.bf16.msra.mxu0 %v404
      %484 = vmatprep.subr.bf16.mxu0 %v472
      %485 = vmatpush1.bf16.msra.mxu0 %v469
      %486 = vmatprep.subr.bf16.mxu0 0
      %487 = vmatpush1.bf16.msra.mxu0 0
      %488 = vmatprep.subr.bf16.mxu0 0
      %489 = vmatpush1.bf16.msra.mxu0 0
      %490 = vmatprep.subr.bf16.mxu0 0
      %491 = vmatpush1.bf16.msra.mxu0 0
      %492 = vmatprep.subr.bf16.mxu0 0
      %493 = vmatpush1.bf16.msra.mxu0 0
      %494 = vmatprep.subr.bf16.mxu0 0
      %495 = vmatpush1.bf16.msra.mxu0 0
      %496 = vmatprep.subr.bf16.mxu0 0
      %497 = vmatpush1.bf16.msra.mxu0 0
      %498 = vmatprep.subr.bf16.mxu0 0
      %499 = vmatpush1.bf16.msra.mxu0 0
      %500 = vmatprep.subr.bf16.mxu0 0
      %501 = vmatpush1.bf16.msra.mxu0 0
      %502 = vmatprep.subr.bf16.mxu0 0
      %503 = vmatpush1.bf16.msra.mxu0 0
      %504 = vmatprep.subr.bf16.mxu0 0
      %505 = vmatpush1.bf16.msra.mxu0 0
      %506 = vmatprep.mubr.bf16.mxu0 0
      %507 = vmatmul.mubr.bf16.gmra.mrb[0].mxu0 %v420
      %v508 = vpop.f32.mrb[0].mxu0
      %v509 = vadd.f32 %v276, %v508
      %v510 = vpop.f32.mrb[0].mxu0
      %v511 = vadd.f32 %v280, %v510
      %v512 = vpop.f32.mrb[0].mxu0
      %v513 = vadd.f32 %v276, %v512
      %v514 = vpop.f32.mrb[0].mxu0
      %v515 = vadd.f32 %v280, %v514
      %516 = vmatprep.mubr.bf16.mxu0 0
      %517 = vmatmul.mubr.bf16.gmra.mrb[0].mxu0 %v423
      %v518 = vpop.f32.mrb[0].mxu0
      %v519 = vadd.f32 %v276, %v518
      %v520 = vpop.f32.mrb[0].mxu0
      %v521 = vadd.f32 %v280, %v520
      %v522 = vpop.f32.mrb[0].mxu0
      %v523 = vadd.f32 %v276, %v522
      %v524 = vpop.f32.mrb[0].mxu0
      %v525 = vadd.f32 %v280, %v524
      %526 = vmatprep.mubr.bf16.mxu0 0
      %527 = vmatmul.mubr.bf16.gmra.mrb[0].mxu0 %v426
      %v528 = vpop.f32.mrb[0].mxu0
      %v529 = vadd.f32 %v276, %v528
      %v530 = vpop.f32.mrb[0].mxu0
      %v531 = vadd.f32 %v280, %v530
      %v532 = vpop.f32.mrb[0].mxu0
      %v533 = vadd.f32 %v276, %v532
      %v534 = vpop.f32.mrb[0].mxu0
      %v535 = vadd.f32 %v280, %v534
      %536 = vmatprep.mubr.bf16.mxu0 0
      %537 = vmatmul.mubr.bf16.gmra.mrb[0].mxu0 %v429
      %v538 = vpop.f32.mrb[0].mxu0
      %v539 = vadd.f32 %v276, %v538
      %v540 = vpop.f32.mrb[0].mxu0
      %v541 = vadd.f32 %v280, %v540
      %v542 = vpop.f32.mrb[0].mxu0
      %v543 = vadd.f32 %v276, %v542
      %v544 = vpop.f32.mrb[0].mxu0
      %v545 = vadd.f32 %v280, %v544
      %546 = vmatprep.mubr.bf16.mxu0 0
      %547 = vmatmul.mubr.bf16.gmra.mrb[0].mxu0 %v432
      %v548 = vpop.f32.mrb[0].mxu0
      %v549 = vadd.f32 %v276, %v548
      %v550 = vpop.f32.mrb[0].mxu0
      %v551 = vadd.f32 %v280, %v550
      %v552 = vpop.f32.mrb[0].mxu0
      %v553 = vadd.f32 %v276, %v552
      %v554 = vpop.f32.mrb[0].mxu0
      %v555 = vadd.f32 %v280, %v554
      %556 = vmatprep.mubr.bf16.mxu0 0
      %557 = vmatmul.mubr.bf16.gmra.mrb[0].mxu0 %v435
      %v558 = vpop.f32.mrb[0].mxu0
      %v559 = vadd.f32 %v276, %v558
      %v560 = vpop.f32.mrb[0].mxu0
      %v561 = vadd.f32 %v280, %v560
      %v562 = vpop.f32.mrb[0].mxu0
      %v563 = vadd.f32 %v276, %v562
      %v564 = vpop.f32.mrb[0].mxu0
      %v565 = vadd.f32 %v280, %v564
      %566 = vmatprep.mubr.bf16.mxu0 0
      %567 = vmatmul.mubr.bf16.gmra.mrb[0].mxu0 %v438
      %v568 = vpop.f32.mrb[0].mxu0
      %v569 = vadd.f32 %v276, %v568
      %v570 = vpop.f32.mrb[0].mxu0
      %v571 = vadd.f32 %v280, %v570
      %v572 = vpop.f32.mrb[0].mxu0
      %v573 = vadd.f32 %v276, %v572
      %v574 = vpop.f32.mrb[0].mxu0
      %v575 = vadd.f32 %v280, %v574
      %576 = vmatprep.mubr.bf16.mxu0 0
      %577 = vmatmul.mubr.bf16.gmra.mrb[0].mxu0 %v441
      %v578 = vpop.f32.mrb[0].mxu0
      %v579 = vadd.f32 %v276, %v578
      %v580 = vpop.f32.mrb[0].mxu0
      %v581 = vadd.f32 %v280, %v580
      %v582 = vpop.f32.mrb[0].mxu0
      %v583 = vadd.f32 %v276, %v582
      %v584 = vpop.f32.mrb[0].mxu0
      %v585 = vadd.f32 %v280, %v584
      %586 = vmatprep.mubr.bf16.mxu0 0
      %587 = vmatmul.mubr.bf16.gmra.mrb[0].mxu0 %v444
      %v588 = vpop.f32.mrb[0].mxu0
      %v589 = vadd.f32 %v276, %v588
      %v590 = vpop.f32.mrb[0].mxu0
      %v591 = vadd.f32 %v280, %v590
      %v592 = vpop.f32.mrb[0].mxu0
      %v593 = vadd.f32 %v276, %v592
      %v594 = vpop.f32.mrb[0].mxu0
      %v595 = vadd.f32 %v280, %v594
      %596 = vmatprep.mubr.bf16.mxu0 0
      %597 = vmatmul.mubr.bf16.gmra.mrb[0].mxu0 %v447
      %v598 = vpop.f32.mrb[0].mxu0
      %v599 = vadd.f32 %v276, %v598
      %v600 = vpop.f32.mrb[0].mxu0
      %v601 = vadd.f32 %v280, %v600
      %v602 = vpop.f32.mrb[0].mxu0
      %v603 = vadd.f32 %v276, %v602
      %v604 = vpop.f32.mrb[0].mxu0
      %v605 = vadd.f32 %v280, %v604
      %606 = vmatprep.mubr.bf16.mxu0 0
      %607 = vmatmul.mubr.bf16.gmra.mrb[0].mxu0 %v450
      %v608 = vpop.f32.mrb[0].mxu0
      %v609 = vadd.f32 %v276, %v608
      %v610 = vpop.f32.mrb[0].mxu0
      %v611 = vadd.f32 %v280, %v610
      %v612 = vpop.f32.mrb[0].mxu0
      %v613 = vadd.f32 %v276, %v612
      %v614 = vpop.f32.mrb[0].mxu0
      %v615 = vadd.f32 %v280, %v614
      %616 = vmatprep.mubr.bf16.mxu0 0
      %617 = vmatmul.mubr.bf16.gmra.mrb[0].mxu0 %v453
      %v618 = vpop.f32.mrb[0].mxu0
      %v619 = vadd.f32 %v276, %v618
      %v620 = vpop.f32.mrb[0].mxu0
      %v621 = vadd.f32 %v280, %v620
      %v622 = vpop.f32.mrb[0].mxu0
      %v623 = vadd.f32 %v276, %v622
      %v624 = vpop.f32.mrb[0].mxu0
      %v625 = vadd.f32 %v280, %v624
      %626 = vmatprep.mubr.bf16.mxu0 0
      %627 = vmatmul.mubr.bf16.gmra.mrb[0].mxu0 %v456
      %v628 = vpop.f32.mrb[0].mxu0
      %v629 = vadd.f32 %v276, %v628
      %v630 = vpop.f32.mrb[0].mxu0
      %v631 = vadd.f32 %v280, %v630
      %v632 = vpop.f32.mrb[0].mxu0
      %v633 = vadd.f32 %v276, %v632
      %v634 = vpop.f32.mrb[0].mxu0
      %v635 = vadd.f32 %v280, %v634
      %636 = vmatprep.mubr.bf16.mxu0 0
      %637 = vmatmul.mubr.bf16.gmra.mrb[0].mxu0 %v459
      %v638 = vpop.f32.mrb[0].mxu0
      %v639 = vadd.f32 %v276, %v638
      %v640 = vpop.f32.mrb[0].mxu0
      %v641 = vadd.f32 %v280, %v640
      %v642 = vpop.f32.mrb[0].mxu0
      %v643 = vadd.f32 %v276, %v642
      %v644 = vpop.f32.mrb[0].mxu0
      %v645 = vadd.f32 %v280, %v644
      %646 = vmatprep.mubr.bf16.mxu0 0
      %647 = vmatmul.mubr.bf16.gmra.mrb[0].mxu0 %v462
      %v648 = vpop.f32.mrb[0].mxu0
      %v649 = vadd.f32 %v276, %v648
      %v650 = vpop.f32.mrb[0].mxu0
      %v651 = vadd.f32 %v280, %v650
      %v652 = vpop.f32.mrb[0].mxu0
      %v653 = vadd.f32 %v276, %v652
      %v654 = vpop.f32.mrb[0].mxu0
      %v655 = vadd.f32 %v280, %v654
      %656 = vmatprep.mubr.bf16.mxu0 0
      %657 = vmatmul.mubr.bf16.gmra.mrb[0].mxu0 %v465
      %v658 = vpop.f32.mrb[0].mxu0
      %v659 = vadd.f32 %v276, %v658
      %v660 = vpop.f32.mrb[0].mxu0
      %v661 = vadd.f32 %v280, %v660
      %v662 = vpop.f32.mrb[0].mxu0
      %v663 = vadd.f32 %v276, %v662
      %v664 = vpop.f32.mrb[0].mxu0
      %v665 = vadd.f32 %v280, %v664
      %666 = vdwg.mxu0
      %667 = vxpose.xlu0.b32.start [1/16] %v509, 128
      %668 = vxpose.xlu0.b32.cont [2/16] %v513, 128
      %669 = vxpose.xlu0.b32.cont [3/16] %v519, 128
      %670 = vxpose.xlu0.b32.cont [4/16] %v523, 128
      %671 = vxpose.xlu0.b32.cont [5/16] %v529, 128
      %672 = vxpose.xlu0.b32.cont [6/16] %v533, 128
      %673 = vxpose.xlu0.b32.cont [7/16] %v539, 128
      %674 = vxpose.xlu0.b32.cont [8/16] %v543, 128
      %675 = vxpose.xlu0.b32.cont [9/16] %v549, 128
      %676 = vxpose.xlu0.b32.cont [10/16] %v553, 128
      %677 = vxpose.xlu0.b32.cont [11/16] %v559, 128
      %678 = vxpose.xlu0.b32.cont [12/16] %v563, 128
      %679 = vxpose.xlu0.b32.cont [13/16] %v569, 128
      %680 = vxpose.xlu0.b32.cont [14/16] %v573, 128
      %681 = vxpose.xlu0.b32.cont [15/16] %v579, 128
      %682 = vxpose.xlu0.b32.end [16/16] %v583, 128
      %v683 = vpop.trf.xlu0
      %v684 = vpop.trf.xlu0
      %v685 = vpop.trf.xlu0
      %v686 = vpop.trf.xlu0
      %v687 = vpop.trf.xlu0
      %v688 = vpop.trf.xlu0
      %v689 = vpop.trf.xlu0
      %v690 = vpop.trf.xlu0
      %v691 = vpop.trf.xlu0
      %v692 = vpop.trf.xlu0
      %v693 = vpop.trf.xlu0
      %v694 = vpop.trf.xlu0
      %v695 = vpop.trf.xlu0
      %v696 = vpop.trf.xlu0
      %v697 = vpop.trf.xlu0
      %v698 = vpop.trf.xlu0
      %699 = vxpose.xlu0.b32.start [1/16] %v511, 128
      %700 = vxpose.xlu0.b32.cont [2/16] %v515, 128
      %701 = vxpose.xlu0.b32.cont [3/16] %v521, 128
      %702 = vxpose.xlu0.b32.cont [4/16] %v525, 128
      %703 = vxpose.xlu0.b32.cont [5/16] %v531, 128
      %704 = vxpose.xlu0.b32.cont [6/16] %v535, 128
      %705 = vxpose.xlu0.b32.cont [7/16] %v541, 128
      %706 = vxpose.xlu0.b32.cont [8/16] %v545, 128
      %707 = vxpose.xlu0.b32.cont [9/16] %v551, 128
      %708 = vxpose.xlu0.b32.cont [10/16] %v555, 128
      %709 = vxpose.xlu0.b32.cont [11/16] %v561, 128
      %710 = vxpose.xlu0.b32.cont [12/16] %v565, 128
      %711 = vxpose.xlu0.b32.cont [13/16] %v571, 128
      %712 = vxpose.xlu0.b32.cont [14/16] %v575, 128
      %713 = vxpose.xlu0.b32.cont [15/16] %v581, 128
      %714 = vxpose.xlu0.b32.end [16/16] %v585, 128
      %v715 = vpop.trf.xlu0
      %v716 = vpop.trf.xlu0
      %v717 = vpop.trf.xlu0
      %v718 = vpop.trf.xlu0
      %v719 = vpop.trf.xlu0
      %v720 = vpop.trf.xlu0
      %v721 = vpop.trf.xlu0
      %v722 = vpop.trf.xlu0
      %v723 = vpop.trf.xlu0
      %v724 = vpop.trf.xlu0
      %v725 = vpop.trf.xlu0
      %v726 = vpop.trf.xlu0
      %v727 = vpop.trf.xlu0
      %v728 = vpop.trf.xlu0
      %v729 = vpop.trf.xlu0
      %v730 = vpop.trf.xlu0
      %731 = vxpose.xlu0.b32.start [1/16] %v589, 128
      %732 = vxpose.xlu0.b32.cont [2/16] %v593, 128
      %733 = vxpose.xlu0.b32.cont [3/16] %v599, 128
      %734 = vxpose.xlu0.b32.cont [4/16] %v603, 128
      %735 = vxpose.xlu0.b32.cont [5/16] %v609, 128
      %736 = vxpose.xlu0.b32.cont [6/16] %v613, 128
      %737 = vxpose.xlu0.b32.cont [7/16] %v619, 128
      %738 = vxpose.xlu0.b32.cont [8/16] %v623, 128
      %739 = vxpose.xlu0.b32.cont [9/16] %v629, 128
      %740 = vxpose.xlu0.b32.cont [10/16] %v633, 128
      %741 = vxpose.xlu0.b32.cont [11/16] %v639, 128
      %742 = vxpose.xlu0.b32.cont [12/16] %v643, 128
      %743 = vxpose.xlu0.b32.cont [13/16] %v649, 128
      %744 = vxpose.xlu0.b32.cont [14/16] %v653, 128
      %745 = vxpose.xlu0.b32.cont [15/16] %v659, 128
      %746 = vxpose.xlu0.b32.end [16/16] %v663, 128
      %v747 = vpop.trf.xlu0
      %v748 = vpop.trf.xlu0
      %v749 = vpop.trf.xlu0
      %v750 = vpop.trf.xlu0
      %v751 = vpop.trf.xlu0
      %v752 = vpop.trf.xlu0
      %v753 = vpop.trf.xlu0
      %v754 = vpop.trf.xlu0
      %v755 = vpop.trf.xlu0
      %v756 = vpop.trf.xlu0
      %v757 = vpop.trf.xlu0
      %v758 = vpop.trf.xlu0
      %v759 = vpop.trf.xlu0
      %v760 = vpop.trf.xlu0
      %v761 = vpop.trf.xlu0
      %v762 = vpop.trf.xlu0
      %763 = vxpose.xlu0.b32.start [1/16] %v591, 128
      %764 = vxpose.xlu0.b32.cont [2/16] %v595, 128
      %765 = vxpose.xlu0.b32.cont [3/16] %v601, 128
      %766 = vxpose.xlu0.b32.cont [4/16] %v605, 128
      %767 = vxpose.xlu0.b32.cont [5/16] %v611, 128
      %768 = vxpose.xlu0.b32.cont [6/16] %v615, 128
      %769 = vxpose.xlu0.b32.cont [7/16] %v621, 128
      %770 = vxpose.xlu0.b32.cont [8/16] %v625, 128
      %771 = vxpose.xlu0.b32.cont [9/16] %v631, 128
      %772 = vxpose.xlu0.b32.cont [10/16] %v635, 128
      %773 = vxpose.xlu0.b32.cont [11/16] %v641, 128
      %774 = vxpose.xlu0.b32.cont [12/16] %v645, 128
      %775 = vxpose.xlu0.b32.cont [13/16] %v651, 128
      %776 = vxpose.xlu0.b32.cont [14/16] %v655, 128
      %777 = vxpose.xlu0.b32.cont [15/16] %v661, 128
      %778 = vxpose.xlu0.b32.end [16/16] %v665, 128
      %v779 = vpop.trf.xlu0
      %v780 = vpop.trf.xlu0
      %v781 = vpop.trf.xlu0
      %v782 = vpop.trf.xlu0
      %v783 = vpop.trf.xlu0
      %v784 = vpop.trf.xlu0
      %v785 = vpop.trf.xlu0
      %v786 = vpop.trf.xlu0
      %v787 = vpop.trf.xlu0
      %v788 = vpop.trf.xlu0
      %v789 = vpop.trf.xlu0
      %v790 = vpop.trf.xlu0
      %v791 = vpop.trf.xlu0
      %v792 = vpop.trf.xlu0
      %v793 = vpop.trf.xlu0
      %v794 = vpop.trf.xlu0
      %795 = vst [vmem:[%s225] sm:$0xff] %v683
      %796 = vst [vmem:[%s225 + $0x8] sm:$0xff] %v747
      %797 = vst [vmem:[%s225 + $0x10] sm:$0xff] %v684
      %798 = vst [vmem:[%s225 + $0x18] sm:$0xff] %v748
      %799 = vst [vmem:[%s225 + $0x20] sm:$0xff] %v685
      %800 = vst [vmem:[%s225 + $0x28] sm:$0xff] %v749
      %801 = vst [vmem:[%s225 + $0x30] sm:$0xff] %v686
      %802 = vst [vmem:[%s225 + $0x38] sm:$0xff] %v750
      %803 = vst [vmem:[%s225 + $0x40] sm:$0xff] %v687
      %804 = vst [vmem:[%s225 + $0x48] sm:$0xff] %v751
      %805 = vst [vmem:[%s225 + $0x50] sm:$0xff] %v688
      %806 = vst [vmem:[%s225 + $0x58] sm:$0xff] %v752
      %807 = vst [vmem:[%s225 + $0x60] sm:$0xff] %v689
      %808 = vst [vmem:[%s225 + $0x68] sm:$0xff] %v753
      %809 = vst [vmem:[%s225 + $0x70] sm:$0xff] %v690
      %810 = vst [vmem:[%s225 + $0x78] sm:$0xff] %v754
      %811 = vst [vmem:[%s225 + $0x80] sm:$0xff] %v691
      %812 = vst [vmem:[%s225 + $0x88] sm:$0xff] %v755
      %813 = vst [vmem:[%s225 + $0x90] sm:$0xff] %v692
      %814 = vst [vmem:[%s225 + $0x98] sm:$0xff] %v756
      %815 = vst [vmem:[%s225 + $0xa0] sm:$0xff] %v693
      %816 = vst [vmem:[%s225 + $0xa8] sm:$0xff] %v757
      %817 = vst [vmem:[%s225 + $0xb0] sm:$0xff] %v694
      %818 = vst [vmem:[%s225 + $0xb8] sm:$0xff] %v758
      %819 = vst [vmem:[%s225 + $0xc0] sm:$0xff] %v695
      %820 = vst [vmem:[%s225 + $0xc8] sm:$0xff] %v759
      %821 = vst [vmem:[%s225 + $0xd0] sm:$0xff] %v696
      %822 = vst [vmem:[%s225 + $0xd8] sm:$0xff] %v760
      %823 = vst [vmem:[%s225 + $0xe0] sm:$0xff] %v697
      %824 = vst [vmem:[%s225 + $0xe8] sm:$0xff] %v761
      %825 = vst [vmem:[%s225 + $0xf0] sm:$0xff] %v698
      %826 = vst [vmem:[%s225 + $0xf8] sm:$0xff] %v762
      %827 = vst [vmem:[%s225 + $0x100] sm:$0xff] %v715
      %828 = vst [vmem:[%s225 + $0x108] sm:$0xff] %v779
      %829 = vst [vmem:[%s225 + $0x110] sm:$0xff] %v716
      %830 = vst [vmem:[%s225 + $0x118] sm:$0xff] %v780
      %831 = vst [vmem:[%s225 + $0x120] sm:$0xff] %v717
      %832 = vst [vmem:[%s225 + $0x128] sm:$0xff] %v781
      %833 = vst [vmem:[%s225 + $0x130] sm:$0xff] %v718
      %834 = vst [vmem:[%s225 + $0x138] sm:$0xff] %v782
      %835 = vst [vmem:[%s225 + $0x140] sm:$0xff] %v719
      %836 = vst [vmem:[%s225 + $0x148] sm:$0xff] %v783
      %837 = vst [vmem:[%s225 + $0x150] sm:$0xff] %v720
      %838 = vst [vmem:[%s225 + $0x158] sm:$0xff] %v784
      %839 = vst [vmem:[%s225 + $0x160] sm:$0xff] %v721
      %840 = vst [vmem:[%s225 + $0x168] sm:$0xff] %v785
      %841 = vst [vmem:[%s225 + $0x170] sm:$0xff] %v722
      %842 = vst [vmem:[%s225 + $0x178] sm:$0xff] %v786
      %843 = vst [vmem:[%s225 + $0x180] sm:$0xff] %v723
      %844 = vst [vmem:[%s225 + $0x188] sm:$0xff] %v787
      %845 = vst [vmem:[%s225 + $0x190] sm:$0xff] %v724
      %846 = vst [vmem:[%s225 + $0x198] sm:$0xff] %v788
      %847 = vst [vmem:[%s225 + $0x1a0] sm:$0xff] %v725
      %848 = vst [vmem:[%s225 + $0x1a8] sm:$0xff] %v789
      %849 = vst [vmem:[%s225 + $0x1b0] sm:$0xff] %v726
      %850 = vst [vmem:[%s225 + $0x1b8] sm:$0xff] %v790
      %851 = vst [vmem:[%s225 + $0x1c0] sm:$0xff] %v727
      %852 = vst [vmem:[%s225 + $0x1c8] sm:$0xff] %v791
      %853 = vst [vmem:[%s225 + $0x1d0] sm:$0xff] %v728
      %854 = vst [vmem:[%s225 + $0x1d8] sm:$0xff] %v792
      %855 = vst [vmem:[%s225 + $0x1e0] sm:$0xff] %v729
      %856 = vst [vmem:[%s225 + $0x1e8] sm:$0xff] %v793
      %857 = vst [vmem:[%s225 + $0x1f0] sm:$0xff] %v730
      %858 = vst [vmem:[%s225 + $0x1f8] sm:$0xff] %v794
      %s859 = smul.u32 2, %s19
      %p860 = scmp.lt.s32.totalorder %s18, 1
      %s861 = scalar_select %p860, %s18, 1
      %p862 = scmp.lt.s32.totalorder %s859, 1
      %s863 = scalar_select %p862, %s859, 1
      %s864 = smul.addr %s861, 64
      %s865 = sadd.s32 %s863, %s864
      %s866 = smul.addr %s865, 8
      %s867 = scalar_lea.vmem %s3, %s866
      // Predicated region
      $region33: #{aspp_forward.1} parent=31 // pred_check
        %p868 = pneg %p121
      $region34: #{aspp_forward.1} parent=31 // pred_check_branch
        %870 = sbr.rel (%p868) target = $region36
      $region35: #{aspp_forward.1} parent=31 // pred_region
        %s871 = smul.u32 2, %s19
      $region36: #{aspp_forward.1} parent=31 // pred_fallthru
        _
    $region32: #{aspp_forward.1} parent=5 // pred_fallthru
      _
    %p872 = scmp.le.s32.totalorder 2, %s9
    // Predicated region
    $region37: #{aspp_forward.1} parent=5 // pred_check
      %p873 = pneg %p872
    $region38: #{aspp_forward.1} parent=5 // pred_check_branch
      %875 = sbr.rel (%p873) target = $region40
    $region39: #{aspp_forward.1} parent=5 // pred_region
      %s876 = ssub.s32 %s9, 2
      // Predicated region
      $region41: #{aspp_forward.1} parent=39 // pred_check
        %p877 = pneg %p127
      $region42: #{aspp_forward.1} parent=39 // pred_check_branch
        %879 = sbr.rel (%p877) target = $region44
      $region43: #{aspp_forward.1} parent=39 // pred_region
        %s880 = smul.u32 2, %s21
        %p881 = scmp.lt.s32.totalorder %s20, 1
        %s882 = scalar_select %p881, %s20, 1
        %p883 = scmp.lt.s32.totalorder %s880, 1
        %s884 = scalar_select %p883, %s880, 1
        %s885 = smul.addr %s882, 64
        %s886 = sadd.s32 %s884, %s885
        %s887 = smul.addr %s886, 8
        %s888 = scalar_lea.vmem %s3, %s887
      $region44: #{aspp_forward.1} parent=39 // pred_fallthru
        _
    $region40: #{aspp_forward.1} parent=5 // pred_fallthru
      _
  $region6: #{aspp_forward.1} parent=0 // loop_footer
    %s13 = sadd.s32 1, %s9
  $region7: #{aspp_forward.1} parent=0 // loop_footer_branch
    %8 = sbr.rel target = $region3
  $region8: #{aspp_forward.1} parent=0 // loop_exit
    _

</llo_original>
